<compile_context>
chip_gen: v7x
topology: tpu7x:2x2x1
jax: 0.10.0
libtpu: 0.0.40
codegen_flags: <defaults>
</compile_context>

<pallas_src>
import jax
import jax.numpy as jnp
from jax.experimental import pallas as pl
from jax.experimental.pallas import tpu as pltpu


def _round_up(x, m):
    return (x + m - 1) // m * m


def _mlp_kernel(x_ref, w1_ref, b1_ref, w2_ref, b2_ref, o_ref):
    # x_ref:  (TM, Fp)  bf16 input tile (streamed)
    # w1_ref: (Fp, Hp)  bf16 fc1 weight, (in, out) layout, VMEM-resident
    # b1_ref: (1, Hp)   f32 fc1 bias
    # w2_ref: (Hp, Fp)  bf16 fc2 weight, (in, out) layout, VMEM-resident
    # b2_ref: (1, Fp)   f32 fc2 bias
    # o_ref:  (TM, Fp)  f32 output tile (streamed)
    h = jnp.dot(x_ref[...], w1_ref[...], preferred_element_type=jnp.float32)
    h = jnp.maximum(h + b1_ref[...], 0.0)                     # f32 epilogue
    y = jnp.dot(h.astype(w2_ref.dtype), w2_ref[...],
                preferred_element_type=jnp.float32)
    o_ref[...] = (y + b2_ref[...]).astype(o_ref.dtype)


def prepare_params(w1, b1, w2, b2, *, compute_dtype=jnp.bfloat16):
    """One-time weight prep: (in, out) layout, zero-pad to multiples of 128,
    cast to bf16.  Zero padding is mathematically inert; padded output columns
    are sliced off after the kernel."""
    hidden, F = w1.shape
    assert w2.shape == (F, hidden), (w1.shape, w2.shape)
    Hp = _round_up(max(hidden, 128), 128)
    Fp = _round_up(max(F, 128), 128)

    w1p = jnp.zeros((Fp, Hp), compute_dtype).at[:F, :hidden].set(
        w1.T.astype(compute_dtype))
    b1p = jnp.zeros((1, Hp), jnp.float32).at[0, :hidden].set(
        b1.astype(jnp.float32))
    w2p = jnp.zeros((Hp, Fp), compute_dtype).at[:hidden, :F].set(
        w2.T.astype(compute_dtype))
    b2p = jnp.zeros((1, Fp), jnp.float32).at[0, :F].set(
        b2.astype(jnp.float32))
    return dict(w1=w1p, b1=b1p, w2=w2p, b2=b2p, F=F, Fp=Fp, Hp=Hp)


def dynamic_mlp_forward(x, params):
    """x: (B, H, W) float32.  params: output of prepare_params.  -> (B, H, W)."""
    B, H, W = x.shape
    assert W % 2 == 0, "hidden_size = W // 2 requires even W"
    F = H * W
    assert params["F"] == F, "params were prepared for a different feature size"
    Fp, Hp = params["Fp"], params["Hp"]

    # Batch tile: multiple of 16 (bf16 sublane packing), capped at 256 rows.
    TM = min(256, _round_up(B, 16))
    Bp = _round_up(B, TM)

    x_flat = x.reshape(B, F).astype(jnp.bfloat16)
    if Bp != B or Fp != F:
        x_flat = jnp.zeros((Bp, Fp), jnp.bfloat16).at[:B, :F].set(x_flat)

    grid = (Bp // TM,)

    flops = 2 * Bp * Fp * Hp * 2                       # two matmuls
    bytes_accessed = (Bp * Fp * 2                      # x (bf16)
                      + params["w1"].size * 2 + params["w2"].size * 2
                      + (Hp + Fp) * 4                  # biases
                      + Bp * Fp * 4)                   # out (f32)

    # Resident weights/biases + double-buffered x (bf16) and out (f32) tiles.
    vmem_need = (params["w1"].size * 2 + params["w2"].size * 2
                 + (Hp + Fp) * 4
                 + 2 * TM * Fp * (2 + 4))
    vmem_limit = int(min(max(2 * vmem_need, 16 << 20), 64 << 20))

    out_flat = pl.pallas_call(
        _mlp_kernel,
        out_shape=jax.ShapeDtypeStruct((Bp, Fp), jnp.float32),
        grid_spec=pltpu.PrefetchScalarGridSpec(
            num_scalar_prefetch=0,
            grid=grid,
            in_specs=[
                pl.BlockSpec((TM, Fp), lambda i: (i, 0)),   # x tile streams
                pl.BlockSpec((Fp, Hp), lambda i: (0, 0)),   # w1 resident
                pl.BlockSpec((1, Hp), lambda i: (0, 0)),    # b1 resident
                pl.BlockSpec((Hp, Fp), lambda i: (0, 0)),   # w2 resident
                pl.BlockSpec((1, Fp), lambda i: (0, 0)),    # b2 resident
            ],
            out_specs=pl.BlockSpec((TM, Fp), lambda i: (i, 0)),
        ),
        compiler_params=pltpu.CompilerParams(
            dimension_semantics=("parallel",),
            vmem_limit_bytes=vmem_limit,
        ),
        cost_estimate=pl.CostEstimate(
            flops=flops, transcendentals=0, bytes_accessed=bytes_accessed),
    )(x_flat, params["w1"], params["b1"], params["w2"], params["b2"])

    out = out_flat[:B, :F].astype(x.dtype)
    return out.reshape(B, H, W)


def init_params(key, height, width, dtype=jnp.float32):
    """Deterministic init mimicking nn.Linear default (uniform +-1/sqrt(fan_in))."""
    F = height * width
    hidden = width // 2
    k1, k2, k3, k4 = jax.random.split(key, 4)
    bound1 = 1.0 / jnp.sqrt(F)
    bound2 = 1.0 / jnp.sqrt(hidden)
    w1 = jax.random.uniform(k1, (hidden, F), dtype, -bound1, bound1)
    b1 = jax.random.uniform(k2, (hidden,), dtype, -bound1, bound1)
    w2 = jax.random.uniform(k3, (F, hidden), dtype, -bound2, bound2)
    b2 = jax.random.uniform(k4, (F,), dtype, -bound2, bound2)
    return w1, b1, w2, b2


if __name__ == "__main__":
    key = jax.random.PRNGKey(0)
    kx, kp = jax.random.split(key)

    B, H, W = 2, 16, 16                      # total_features = 256, hidden = 8
    x = jax.random.normal(kx, (B, H, W), dtype=jnp.float32)
    w1, b1, w2, b2 = init_params(kp, H, W)

    params = prepare_params(w1, b1, w2, b2)  # one-time prep (pad + bf16 + (in,out))
    out = dynamic_mlp_forward(x, params)
    jax.block_until_ready(out)

    # Reference applying the same bf16 input/weight rounding (f32 accumulate),
    # so the check stays tight while exercising the padded kernel path.
    def _bf(a):
        return a.astype(jnp.bfloat16).astype(jnp.float32)

    x_flat = x.reshape(B, H * W)
    h_ref = jnp.maximum(_bf(x_flat) @ _bf(w1).T + b1, 0.0)
    ref = (_bf(h_ref) @ _bf(w2).T + b2).reshape(B, H, W)

    assert out.shape == (B, H, W)
    assert jnp.allclose(out, ref, atol=1e-2, rtol=1e-2), float(
        jnp.max(jnp.abs(out - ref)))

    print("KERNEL_OK")
</pallas_src>

<mosaic_0001>
module attributes {stable_mosaic.version = 11 : i64} {
  func.func @_mlp_kernel(%arg0: i32, %arg1: memref<16x256xbf16, #tpu.memory_space<vmem>>, %arg2: memref<256x128xbf16, #tpu.memory_space<vmem>>, %arg3: memref<1x128xf32, #tpu.memory_space<vmem>>, %arg4: memref<128x256xbf16, #tpu.memory_space<vmem>>, %arg5: memref<1x256xf32, #tpu.memory_space<vmem>>, %arg6: memref<16x256xf32, #tpu.memory_space<vmem>>) attributes {dimension_semantics = [#tpu.dimension_semantics<parallel>], iteration_bounds = array<i64: 1>, scalar_prefetch = 0 : i64, scratch_operands = 0 : i64, tpu.core_type = #tpu.core_type<tc>, window_params = [{transform_indices = @transform_0, window_bounds = array<i64: 16, 256>}, {pipeline_mode = #tpu.pipeline_mode<synchronous>, transform_indices = @transform_1, window_bounds = array<i64: 256, 128>}, {pipeline_mode = #tpu.pipeline_mode<synchronous>, transform_indices = @transform_2, window_bounds = array<i64: 1, 128>}, {pipeline_mode = #tpu.pipeline_mode<synchronous>, transform_indices = @transform_3, window_bounds = array<i64: 128, 256>}, {pipeline_mode = #tpu.pipeline_mode<synchronous>, transform_indices = @transform_4, window_bounds = array<i64: 1, 256>}, {transform_indices = @transform_5, window_bounds = array<i64: 16, 256>}]} {
    %c0 = arith.constant 0 : index
    %c0_0 = arith.constant 0 : index
    %0 = vector.load %arg1[%c0, %c0_0] : memref<16x256xbf16, #tpu.memory_space<vmem>>, vector<16x256xbf16>
    %c0_1 = arith.constant 0 : index
    %c0_2 = arith.constant 0 : index
    %1 = vector.load %arg2[%c0_1, %c0_2] : memref<256x128xbf16, #tpu.memory_space<vmem>>, vector<256x128xbf16>
    %cst = arith.constant dense<0.000000e+00> : vector<16x128xf32>
    %2 = tpu.matmul %0, %1, %cst {dimension_numbers = #tpu.dot_dimension_numbers<[1], [0], [0], [1], [0, 0, 1, 1], [], []>} : vector<16x256xbf16>, vector<256x128xbf16>, vector<16x128xf32> -> vector<16x128xf32>
    %c0_3 = arith.constant 0 : index
    %c0_4 = arith.constant 0 : index
    %3 = vector.load %arg3[%c0_3, %c0_4] : memref<1x128xf32, #tpu.memory_space<vmem>>, vector<1x128xf32>
    %4 = vector.broadcast %3 : vector<1x128xf32> to vector<16x128xf32>
    %5 = arith.addf %2, %4 : vector<16x128xf32>
    %cst_5 = arith.constant 0.000000e+00 : f32
    %6 = vector.broadcast %cst_5 : f32 to vector<16x128xf32>
    %7 = arith.maximumf %5, %6 : vector<16x128xf32>
    %8 = arith.truncf %7 : vector<16x128xf32> to vector<16x128xbf16>
    %c0_6 = arith.constant 0 : index
    %c0_7 = arith.constant 0 : index
    %9 = vector.load %arg4[%c0_6, %c0_7] : memref<128x256xbf16, #tpu.memory_space<vmem>>, vector<128x256xbf16>
    %cst_8 = arith.constant dense<0.000000e+00> : vector<16x256xf32>
    %10 = tpu.matmul %8, %9, %cst_8 {dimension_numbers = #tpu.dot_dimension_numbers<[1], [0], [0], [1], [0, 0, 1, 1], [], []>} : vector<16x128xbf16>, vector<128x256xbf16>, vector<16x256xf32> -> vector<16x256xf32>
    %c0_9 = arith.constant 0 : index
    %c0_10 = arith.constant 0 : index
    %11 = vector.load %arg5[%c0_9, %c0_10] : memref<1x256xf32, #tpu.memory_space<vmem>>, vector<1x256xf32>
    %12 = vector.broadcast %11 : vector<1x256xf32> to vector<16x256xf32>
    %13 = arith.addf %10, %12 : vector<16x256xf32>
    %c0_11 = arith.constant 0 : index
    %c0_12 = arith.constant 0 : index
    %14 = vector.load %arg6[%c0_11, %c0_12] : memref<16x256xf32, #tpu.memory_space<vmem>>, vector<16x256xf32>
    tpu.vector_store %arg6[%c0_11, %c0_12], %13 {strides = array<i32>} : memref<16x256xf32, #tpu.memory_space<vmem>>, vector<16x256xf32>,
    return
  }
  func.func @transform_0(%arg0: i32) -> (i32, i32) {
    %c0_i32 = arith.constant 0 : i32
    %c0_i32_0 = arith.constant 0 : i32
    return %arg0, %c0_i32 : i32, i32
  }
  func.func @transform_1(%arg0: i32) -> (i32, i32) {
    %c0_i32 = arith.constant 0 : i32
    %c0_i32_0 = arith.constant 0 : i32
    %c0_i32_1 = arith.constant 0 : i32
    return %c0_i32, %c0_i32_0 : i32, i32
  }
  func.func @transform_2(%arg0: i32) -> (i32, i32) {
    %c0_i32 = arith.constant 0 : i32
    %c0_i32_0 = arith.constant 0 : i32
    %c0_i32_1 = arith.constant 0 : i32
    return %c0_i32, %c0_i32_0 : i32, i32
  }
  func.func @transform_3(%arg0: i32) -> (i32, i32) {
    %c0_i32 = arith.constant 0 : i32
    %c0_i32_0 = arith.constant 0 : i32
    %c0_i32_1 = arith.constant 0 : i32
    return %c0_i32, %c0_i32_0 : i32, i32
  }
  func.func @transform_4(%arg0: i32) -> (i32, i32) {
    %c0_i32 = arith.constant 0 : i32
    %c0_i32_0 = arith.constant 0 : i32
    %c0_i32_1 = arith.constant 0 : i32
    return %c0_i32, %c0_i32_0 : i32, i32
  }
  func.func @transform_5(%arg0: i32) -> (i32, i32) {
    %c0_i32 = arith.constant 0 : i32
    %c0_i32_0 = arith.constant 0 : i32
    return %arg0, %c0_i32 : i32, i32
  }
}

</mosaic_0001>

<llo_original>
// kernel: tpu_custom_call.1
$region0: #{tpu_custom_call.1}
  #allocation0 [shape = 'u32[]', space=smem, size = 0x4, offset = 0x4, fixed_abs, tag = 'smem constant byte address 0x4 - core index']
  #allocation1 [shape = 'u32[144,128]{1,0:T(1,128)}', space=vmem, size = 0x12000, scoped, tag = 'internal scratch']
  %s0 = inlined_call_operand.hbm [shape: bf16[16,256], index: 0, kind: input, shape index: {}]
  %s1 = inlined_call_operand.hbm [shape: bf16[256,128], index: 1, kind: input, shape index: {}]
  %s2 = inlined_call_operand.vmem [shape: f32[1,128], index: 2, kind: input, shape index: {}]
  %s3 = inlined_call_operand.hbm [shape: bf16[128,256], index: 3, kind: input, shape index: {}]
  %s4 = inlined_call_operand.vmem [shape: f32[1,256], index: 4, kind: input, shape index: {}]
  %s5 = inlined_call_operand.hbm [shape: f32[16,256], index: 5, kind: output, shape index: {}]
  %s6 = sld [smem:[#allocation0]]
  $region42: #{tpu_custom_call.1} parent=0
    _
  %s8 = ssub.s32 1, %s6
  %s9 = scalar_select 0, %s8, %s6
  $region1: #{tpu_custom_call.1} parent=0
    #allocation2 [shape = 'u8[8192]{0}', space=vmem, size = 0x2000, scoped, tag = 'input window, operand 0, single buffered']
    #allocation3 [shape = 's32[1]{0}', space=sflag, size = 0x4, scoped, tag = 'scoped memory for tpu_custom_call.1']
    #allocation4 [shape = 's32[1]{0}', space=sflag, size = 0x4, scoped, tag = 'scoped memory for tpu_custom_call.1']
    #allocation5 [shape = 'u8[65536]{0}', space=vmem, size = 0x10000, scoped, tag = 'input window, operand 1, single buffered']
    #allocation6 [shape = 's32[1]{0}', space=sflag, size = 0x4, scoped, tag = 'scoped memory for tpu_custom_call.1']
    #allocation7 [shape = 'u8[65536]{0}', space=vmem, size = 0x10000, scoped, tag = 'input window, operand 3, single buffered']
    #allocation8 [shape = 'u8[16384]{0}', space=vmem, size = 0x4000, scoped, tag = 'output window, operand 0, single buffered']
    %10 = vsyncpa [#allocation3], 0
    %11 = vsyncpa [#allocation6], 0
    %12 = vsyncpa [#allocation4], 0
    // Predicated region
    $region2: #{tpu_custom_call.1} parent=1 // pred_check
      _
    $region3: #{tpu_custom_call.1} parent=1 // pred_check_branch
      %14 = sbr.rel (0) target = $region5
    $region4: #{tpu_custom_call.1} parent=1 // pred_region
      %s16 = ssub.s32 256, 256
      %17 = vsyncadd [#allocation3], %s16
      %s18 = sshll.u32 [#allocation2], 4
      %s19 = int_to_ptr.vmem [resolvable:$true] %s18
      %24 = dma.hbm_to_vmem [thread:$0]  %s0, 256, %s19, [#allocation3], 128, 128, 8
    $region5: #{tpu_custom_call.1} parent=1 // pred_fallthru
      _
    // Predicated region
    $region6: #{tpu_custom_call.1} parent=1 // pred_check
      _
    $region7: #{tpu_custom_call.1} parent=1 // pred_check_branch
      %26 = sbr.rel (0) target = $region9
    $region8: #{tpu_custom_call.1} parent=1 // pred_region
      %s28 = ssub.s32 2048, 2048
      %29 = vsyncadd [#allocation6], %s28
      %s30 = sshll.u32 [#allocation5], 4
      %s31 = int_to_ptr.vmem [resolvable:$true] %s30
      %36 = dma.hbm_to_vmem [thread:$0]  %s1, 2048, %s31, [#allocation6], 64, 64, 4
    $region9: #{tpu_custom_call.1} parent=1 // pred_fallthru
      _
    // Predicated region
    $region10: #{tpu_custom_call.1} parent=1 // pred_check
      _
    $region11: #{tpu_custom_call.1} parent=1 // pred_check_branch
      %38 = sbr.rel (0) target = $region13
    $region12: #{tpu_custom_call.1} parent=1 // pred_region
      _
    $region13: #{tpu_custom_call.1} parent=1 // pred_fallthru
      _
    // Predicated region
    $region14: #{tpu_custom_call.1} parent=1 // pred_check
      _
    $region15: #{tpu_custom_call.1} parent=1 // pred_check_branch
      %40 = sbr.rel (0) target = $region17
    $region16: #{tpu_custom_call.1} parent=1 // pred_region
      %s42 = ssub.s32 2048, 2048
      %43 = vsyncadd [#allocation6], %s42
      %s44 = sshll.u32 [#allocation7], 4
      %s45 = int_to_ptr.vmem [resolvable:$true] %s44
      %50 = dma.hbm_to_vmem [thread:$0]  %s3, 2048, %s45, [#allocation6], 128, 128, 8
    $region17: #{tpu_custom_call.1} parent=1 // pred_fallthru
      _
    // Predicated region
    $region18: #{tpu_custom_call.1} parent=1 // pred_check
      _
    $region19: #{tpu_custom_call.1} parent=1 // pred_check_branch
      %52 = sbr.rel (0) target = $region21
    $region20: #{tpu_custom_call.1} parent=1 // pred_region
      _
    $region21: #{tpu_custom_call.1} parent=1 // pred_fallthru
      _
    // Predicated region
    $region22: #{tpu_custom_call.1} parent=1 // pred_check
      _
    $region23: #{tpu_custom_call.1} parent=1 // pred_check_branch
      %54 = sbr.rel (0) target = $region25
    $region24: #{tpu_custom_call.1} parent=1 // pred_region
      %55 = dma.done [#allocation3], 256
    $region25: #{tpu_custom_call.1} parent=1 // pred_fallthru
      _
    // Predicated region
    $region26: #{tpu_custom_call.1} parent=1 // pred_check
      _
    $region27: #{tpu_custom_call.1} parent=1 // pred_check_branch
      %57 = sbr.rel (0) target = $region29
    $region28: #{tpu_custom_call.1} parent=1 // pred_region
      %58 = dma.done [#allocation6], 2048
    $region29: #{tpu_custom_call.1} parent=1 // pred_fallthru
      _
    // Predicated region
    $region30: #{tpu_custom_call.1} parent=1 // pred_check
      _
    $region31: #{tpu_custom_call.1} parent=1 // pred_check_branch
      %60 = sbr.rel (0) target = $region33
    $region32: #{tpu_custom_call.1} parent=1 // pred_region
      %61 = dma.done [#allocation6], 2048
    $region33: #{tpu_custom_call.1} parent=1 // pred_fallthru
      _
    %v63 = vld [vmem:[#allocation2] sm:$0xff]
    %v64 = vld [vmem:[#allocation2 + $0x8] sm:$0xff]
    %v65 = vld [vmem:[#allocation5] sm:$0xf]
    %v66 = vld [vmem:[#allocation5 + $0x4] sm:$0xf]
    %v67 = vld [vmem:[#allocation5 + $0x8] sm:$0xf]
    %v68 = vld [vmem:[#allocation5 + $0xc] sm:$0xf]
    %v69 = vld [vmem:[#allocation5 + $0x10] sm:$0xf]
    %v70 = vld [vmem:[#allocation5 + $0x14] sm:$0xf]
    %v71 = vld [vmem:[#allocation5 + $0x18] sm:$0xf]
    %v72 = vld [vmem:[#allocation5 + $0x1c] sm:$0xf]
    %v73 = vld [vmem:[#allocation5 + $0x20] sm:$0xf]
    %v74 = vld [vmem:[#allocation5 + $0x24] sm:$0xf]
    %v75 = vld [vmem:[#allocation5 + $0x28] sm:$0xf]
    %v76 = vld [vmem:[#allocation5 + $0x2c] sm:$0xf]
    %v77 = vld [vmem:[#allocation5 + $0x30] sm:$0xf]
    %v78 = vld [vmem:[#allocation5 + $0x34] sm:$0xf]
    %v79 = vld [vmem:[#allocation5 + $0x38] sm:$0xf]
    %v80 = vld [vmem:[#allocation5 + $0x3c] sm:$0xf]
    %v81 = vld [vmem:[#allocation5 + $0x40] sm:$0xf]
    %v82 = vld [vmem:[#allocation5 + $0x44] sm:$0xf]
    %v83 = vld [vmem:[#allocation5 + $0x48] sm:$0xf]
    %v84 = vld [vmem:[#allocation5 + $0x4c] sm:$0xf]
    %v85 = vld [vmem:[#allocation5 + $0x50] sm:$0xf]
    %v86 = vld [vmem:[#allocation5 + $0x54] sm:$0xf]
    %v87 = vld [vmem:[#allocation5 + $0x58] sm:$0xf]
    %v88 = vld [vmem:[#allocation5 + $0x5c] sm:$0xf]
    %v89 = vld [vmem:[#allocation5 + $0x60] sm:$0xf]
    %v90 = vld [vmem:[#allocation5 + $0x64] sm:$0xf]
    %v91 = vld [vmem:[#allocation5 + $0x68] sm:$0xf]
    %v92 = vld [vmem:[#allocation5 + $0x6c] sm:$0xf]
    %v93 = vld [vmem:[#allocation5 + $0x70] sm:$0xf]
    %v94 = vld [vmem:[#allocation5 + $0x74] sm:$0xf]
    %v95 = vld [vmem:[#allocation5 + $0x78] sm:$0xf]
    %v96 = vld [vmem:[#allocation5 + $0x7c] sm:$0xf]
    %v97 = vld [vmem:[%s2] sm:$0x1]
    %v99 = vlaneseq
    %v100 = vshrl.u32 %v99, 7
    %v101 = vsub.s32 0, %v100
    %v102 = vrot.slane %v97, %v101
    %v106 = vunpack.c.l.b16 %v63
    %v107 = vunpack.c.h.b16 %v63
    %v108 = vunpack.c.l.b16 %v64
    %v109 = vunpack.c.h.b16 %v64
    %v110 = vpack.c.b16 %v108, %v106
    %v111 = vpack.c.b16 %v109, %v107
    %v146 = vunpack.c.l.b16 %v65
    %v147 = vunpack.c.l.b16 %v66
    %v148 = vunpack.c.l.b16 %v67
    %v149 = vunpack.c.l.b16 %v68
    %v150 = vunpack.c.l.b16 %v69
    %v151 = vunpack.c.l.b16 %v70
    %v152 = vunpack.c.l.b16 %v71
    %v153 = vunpack.c.l.b16 %v72
    %v154 = vunpack.c.l.b16 %v73
    %v155 = vunpack.c.l.b16 %v74
    %v156 = vunpack.c.l.b16 %v75
    %v157 = vunpack.c.l.b16 %v76
    %v158 = vunpack.c.l.b16 %v77
    %v159 = vunpack.c.l.b16 %v78
    %v160 = vunpack.c.l.b16 %v79
    %v161 = vunpack.c.l.b16 %v80
    %v162 = vunpack.c.l.b16 %v81
    %v163 = vunpack.c.l.b16 %v82
    %v164 = vunpack.c.l.b16 %v83
    %v165 = vunpack.c.l.b16 %v84
    %v166 = vunpack.c.l.b16 %v85
    %v167 = vunpack.c.l.b16 %v86
    %v168 = vunpack.c.l.b16 %v87
    %v169 = vunpack.c.l.b16 %v88
    %v170 = vunpack.c.l.b16 %v89
    %v171 = vunpack.c.l.b16 %v90
    %v172 = vunpack.c.l.b16 %v91
    %v173 = vunpack.c.l.b16 %v92
    %v174 = vunpack.c.l.b16 %v93
    %v175 = vunpack.c.l.b16 %v94
    %v176 = vunpack.c.l.b16 %v95
    %v177 = vunpack.c.l.b16 %v96
    %v178 = vpack.c.b16 %v147, %v146
    %v179 = vpack.c.b16 %v149, %v148
    %v180 = vpack.c.b16 %v151, %v150
    %v181 = vpack.c.b16 %v153, %v152
    %v182 = vpack.c.b16 %v155, %v154
    %v183 = vpack.c.b16 %v157, %v156
    %v184 = vpack.c.b16 %v159, %v158
    %v185 = vpack.c.b16 %v161, %v160
    %v186 = vpack.c.b16 %v163, %v162
    %v187 = vpack.c.b16 %v165, %v164
    %v188 = vpack.c.b16 %v167, %v166
    %v189 = vpack.c.b16 %v169, %v168
    %v190 = vpack.c.b16 %v171, %v170
    %v191 = vpack.c.b16 %v173, %v172
    %v192 = vpack.c.b16 %v175, %v174
    %v193 = vpack.c.b16 %v177, %v176
    %210 = vmatprep.subr.bf16.mxu0 0
    %211 = vmatpush1.bf16.msra.mxu0 %v178
    %212 = vmatprep.subr.bf16.mxu0 0
    %213 = vmatpush1.bf16.msra.mxu0 %v179
    %214 = vmatprep.subr.bf16.mxu0 0
    %215 = vmatpush1.bf16.msra.mxu0 %v180
    %216 = vmatprep.subr.bf16.mxu0 0
    %217 = vmatpush1.bf16.msra.mxu0 %v181
    %218 = vmatprep.subr.bf16.mxu0 0
    %219 = vmatpush1.bf16.msra.mxu0 %v182
    %220 = vmatprep.subr.bf16.mxu0 0
    %221 = vmatpush1.bf16.msra.mxu0 %v183
    %222 = vmatprep.subr.bf16.mxu0 0
    %223 = vmatpush1.bf16.msra.mxu0 %v184
    %224 = vmatprep.subr.bf16.mxu0 0
    %225 = vmatpush1.bf16.msra.mxu0 %v185
    %226 = vmatprep.subr.bf16.mxu0 0
    %227 = vmatpush1.bf16.msra.mxu0 %v186
    %228 = vmatprep.subr.bf16.mxu0 0
    %229 = vmatpush1.bf16.msra.mxu0 %v187
    %230 = vmatprep.subr.bf16.mxu0 0
    %231 = vmatpush1.bf16.msra.mxu0 %v188
    %232 = vmatprep.subr.bf16.mxu0 0
    %233 = vmatpush1.bf16.msra.mxu0 %v189
    %234 = vmatprep.subr.bf16.mxu0 0
    %235 = vmatpush1.bf16.msra.mxu0 %v190
    %236 = vmatprep.subr.bf16.mxu0 0
    %237 = vmatpush1.bf16.msra.mxu0 %v191
    %238 = vmatprep.subr.bf16.mxu0 0
    %239 = vmatpush1.bf16.msra.mxu0 %v192
    %240 = vmatprep.subr.bf16.mxu0 0
    %241 = vmatpush1.bf16.msra.mxu0 %v193
    %242 = vmatprep.mubr.bf16.mxu0 %v111
    %243 = vmatmul.mubr.bf16.gmra.mrb[0].mxu0 %v110
    %v244 = vpop.f32.mrb[0].mxu0
    %v245 = vadd.f32 %v102, %v244
    %v246 = vpop.f32.mrb[0].mxu0
    %v247 = vpop.f32.mrb[0].mxu0
    %v248 = vadd.f32 %v102, %v247
    %v249 = vpop.f32.mrb[0].mxu0
    %250 = vdwg.mxu0
    %v251 = vmax.f32 %v245, 0.0
    %v252 = vmax.f32 %v248, 0.0
    %v253 = vpack.c.bf16 %v252, %v251
    %v254 = vld [vmem:[#allocation7] sm:$0xff]
    %v255 = vld [vmem:[#allocation7 + $0x8] sm:$0xff]
    %v256 = vld [vmem:[#allocation7 + $0x10] sm:$0xff]
    %v257 = vld [vmem:[#allocation7 + $0x18] sm:$0xff]
    %v258 = vld [vmem:[#allocation7 + $0x20] sm:$0xff]
    %v259 = vld [vmem:[#allocation7 + $0x28] sm:$0xff]
    %v260 = vld [vmem:[#allocation7 + $0x30] sm:$0xff]
    %v261 = vld [vmem:[#allocation7 + $0x38] sm:$0xff]
    %v262 = vld [vmem:[#allocation7 + $0x40] sm:$0xff]
    %v263 = vld [vmem:[#allocation7 + $0x48] sm:$0xff]
    %v264 = vld [vmem:[#allocation7 + $0x50] sm:$0xff]
    %v265 = vld [vmem:[#allocation7 + $0x58] sm:$0xff]
    %v266 = vld [vmem:[#allocation7 + $0x60] sm:$0xff]
    %v267 = vld [vmem:[#allocation7 + $0x68] sm:$0xff]
    %v268 = vld [vmem:[#allocation7 + $0x70] sm:$0xff]
    %v269 = vld [vmem:[#allocation7 + $0x78] sm:$0xff]
    %v270 = vld [vmem:[%s4] sm:$0x3]
    %v272 = vlaneseq
    %v273 = vshrl.u32 %v272, 7
    %v274 = vsub.s32 0, %v273
    %v275 = vrot.slane %v270, %v274
    %v276 = vlaneseq
    %v277 = vshrl.u32 %v276, 7
    %v278 = vsub.s32 1, %v277
    %v279 = vrot.slane %v270, %v278
    %v298 = vunpack.c.l.b16 %v254
    %v299 = vunpack.c.h.b16 %v254
    %v300 = vunpack.c.l.b16 %v255
    %v301 = vunpack.c.h.b16 %v255
    %v302 = vunpack.c.l.b16 %v256
    %v303 = vunpack.c.h.b16 %v256
    %v304 = vunpack.c.l.b16 %v257
    %v305 = vunpack.c.h.b16 %v257
    %v306 = vunpack.c.l.b16 %v258
    %v307 = vunpack.c.h.b16 %v258
    %v308 = vunpack.c.l.b16 %v259
    %v309 = vunpack.c.h.b16 %v259
    %v310 = vunpack.c.l.b16 %v260
    %v311 = vunpack.c.h.b16 %v260
    %v312 = vunpack.c.l.b16 %v261
    %v313 = vunpack.c.h.b16 %v261
    %v314 = vunpack.c.l.b16 %v262
    %v315 = vunpack.c.h.b16 %v262
    %v316 = vunpack.c.l.b16 %v263
    %v317 = vunpack.c.h.b16 %v263
    %v318 = vunpack.c.l.b16 %v264
    %v319 = vunpack.c.h.b16 %v264
    %v320 = vunpack.c.l.b16 %v265
    %v321 = vunpack.c.h.b16 %v265
    %v322 = vunpack.c.l.b16 %v266
    %v323 = vunpack.c.h.b16 %v266
    %v324 = vunpack.c.l.b16 %v267
    %v325 = vunpack.c.h.b16 %v267
    %v326 = vunpack.c.l.b16 %v268
    %v327 = vunpack.c.h.b16 %v268
    %v328 = vunpack.c.l.b16 %v269
    %v329 = vunpack.c.h.b16 %v269
    %v330 = vpack.c.b16 %v300, %v298
    %v331 = vpack.c.b16 %v301, %v299
    %v332 = vpack.c.b16 %v304, %v302
    %v333 = vpack.c.b16 %v305, %v303
    %v334 = vpack.c.b16 %v308, %v306
    %v335 = vpack.c.b16 %v309, %v307
    %v336 = vpack.c.b16 %v312, %v310
    %v337 = vpack.c.b16 %v313, %v311
    %v338 = vpack.c.b16 %v316, %v314
    %v339 = vpack.c.b16 %v317, %v315
    %v340 = vpack.c.b16 %v320, %v318
    %v341 = vpack.c.b16 %v321, %v319
    %v342 = vpack.c.b16 %v324, %v322
    %v343 = vpack.c.b16 %v325, %v323
    %v344 = vpack.c.b16 %v328, %v326
    %v345 = vpack.c.b16 %v329, %v327
    %362 = vmatprep.subr.bf16.mxu0 %v331
    %363 = vmatpush1.bf16.msra.mxu0 %v330
    %364 = vmatprep.subr.bf16.mxu0 %v333
    %365 = vmatpush1.bf16.msra.mxu0 %v332
    %366 = vmatprep.subr.bf16.mxu0 %v335
    %367 = vmatpush1.bf16.msra.mxu0 %v334
    %368 = vmatprep.subr.bf16.mxu0 %v337
    %369 = vmatpush1.bf16.msra.mxu0 %v336
    %370 = vmatprep.subr.bf16.mxu0 %v339
    %371 = vmatpush1.bf16.msra.mxu0 %v338
    %372 = vmatprep.subr.bf16.mxu0 %v341
    %373 = vmatpush1.bf16.msra.mxu0 %v340
    %374 = vmatprep.subr.bf16.mxu0 %v343
    %375 = vmatpush1.bf16.msra.mxu0 %v342
    %376 = vmatprep.subr.bf16.mxu0 %v345
    %377 = vmatpush1.bf16.msra.mxu0 %v344
    %378 = vmatprep.subr.bf16.mxu0 0
    %379 = vmatpush1.bf16.msra.mxu0 0
    %380 = vmatprep.subr.bf16.mxu0 0
    %381 = vmatpush1.bf16.msra.mxu0 0
    %382 = vmatprep.subr.bf16.mxu0 0
    %383 = vmatpush1.bf16.msra.mxu0 0
    %384 = vmatprep.subr.bf16.mxu0 0
    %385 = vmatpush1.bf16.msra.mxu0 0
    %386 = vmatprep.subr.bf16.mxu0 0
    %387 = vmatpush1.bf16.msra.mxu0 0
    %388 = vmatprep.subr.bf16.mxu0 0
    %389 = vmatpush1.bf16.msra.mxu0 0
    %390 = vmatprep.subr.bf16.mxu0 0
    %391 = vmatpush1.bf16.msra.mxu0 0
    %392 = vmatprep.subr.bf16.mxu0 0
    %393 = vmatpush1.bf16.msra.mxu0 0
    %394 = vmatprep.mubr.bf16.mxu0 0
    %395 = vmatmul.mubr.bf16.gmra.mrb[0].mxu0 %v253
    %v396 = vpop.f32.mrb[0].mxu0
    %v397 = vadd.f32 %v275, %v396
    %v398 = vpop.f32.mrb[0].mxu0
    %v399 = vadd.f32 %v279, %v398
    %v400 = vpop.f32.mrb[0].mxu0
    %v401 = vadd.f32 %v275, %v400
    %v402 = vpop.f32.mrb[0].mxu0
    %v403 = vadd.f32 %v279, %v402
    %404 = vdwg.mxu0
    %405 = vst [vmem:[#allocation8] sm:$0xff] %v397
    %406 = vst [vmem:[#allocation8 + $0x8] sm:$0xff] %v399
    %407 = vst [vmem:[#allocation8 + $0x10] sm:$0xff] %v401
    %408 = vst [vmem:[#allocation8 + $0x18] sm:$0xff] %v403
    // Predicated region
    $region34: #{tpu_custom_call.1} parent=1 // pred_check
      _
    $region35: #{tpu_custom_call.1} parent=1 // pred_check_branch
      %410 = sbr.rel (0) target = $region37
    $region36: #{tpu_custom_call.1} parent=1 // pred_region
      %s412 = ssub.s32 512, 512
      %413 = vsyncadd [#allocation4], %s412
      %s414 = sshll.u32 [#allocation8], 4
      %s415 = int_to_ptr.vmem [resolvable:$true] %s414
      %420 = dma.vmem_to_hbm [thread:$0]  %s415, 512, %s5, [#allocation4], 256, 256, 16
    $region37: #{tpu_custom_call.1} parent=1 // pred_fallthru
      _
    // Predicated region
    $region38: #{tpu_custom_call.1} parent=1 // pred_check
      _
    $region39: #{tpu_custom_call.1} parent=1 // pred_check_branch
      %422 = sbr.rel (0) target = $region41
    $region40: #{tpu_custom_call.1} parent=1 // pred_region
      %423 = dma.done [#allocation4], 512
    $region41: #{tpu_custom_call.1} parent=1 // pred_fallthru
      _
    %424 = vsyncpa [#allocation3], 1
    %425 = vsyncpa [#allocation6], 1
    %426 = vsyncpa [#allocation4], 1

</llo_original>
